<compile_context>
chip_gen: v7x
topology: tpu7x:2x2x1
jax: 0.10.0
libtpu: 0.0.40
codegen_flags: <defaults>
</compile_context>

<pallas_src>
import functools

import jax
import jax.numpy as jnp
from jax.experimental import pallas as pl
from jax.experimental.pallas import tpu as pltpu

LANES = 128


def _round_up(n, m):
    return ((n + m - 1) // m) * m


def _vmem_limit_bytes():
    """~75% of physical VMEM if queryable, else 48 MiB (safe on v5e/v6e/v7x)."""
    try:
        cap = getattr(pltpu.get_tpu_info(), "vmem_capacity_bytes", None)
        if cap:
            return min(int(cap) * 3 // 4, 100 << 20)
    except Exception:
        pass
    return 48 << 20


def simplenet_kernel(x_ref, w1_ref, b1_ref, w2_ref, b2_ref, o_ref, *,
                     fc1_mac, fc2_reduce):
    """Fused MLP tile in batch-along-lanes layout.

    x_ref : (input_dim, tile_b)   batch on the lane axis (lane-dense DMA)
    w1_ref: (hidden, input_dim)   grid-constant (VMEM resident)
    b1_ref: (hidden, 1)
    w2_ref: (hidden, 1) if fc2_reduce else (out_dim, hidden)
    b2_ref: (out_dim, 1)
    o_ref : (out_dim, tile_b)     lane-dense output row(s)
    """
    x_t = x_ref[...]            # (input_dim, tile_b)
    w1_t = w1_ref[...]          # (hidden, input_dim)

    if fc1_mac:
        # Tiny contraction (Moon data: input_dim == 2): VPU broadcast-MACs instead of an
        # MXU pass that would use <1% of the systolic array and pay its drain latency.
        in_dim = w1_t.shape[1]
        h = w1_t[:, 0:1] * x_t[0:1, :]                     # (hidden, tile_b)
        for k in range(1, in_dim):                         # static unrolled loop
            h = h + w1_t[:, k:k + 1] * x_t[k:k + 1, :]
    else:
        # General path: MXU matmul, f32 accumulate.
        h = jnp.dot(w1_t, x_t, preferred_element_type=jnp.float32)

    h = jnp.maximum(h + b1_ref[...], 0.0)                  # bias + ReLU, f32 epilogue

    # TODO(synk): nn.Dropout(0.2) is stochastic only in training mode; eval-mode identity
    #             is implemented (a training version would use pltpu.prng_seed/random_bits).

    if fc2_reduce:
        # out_dim == 1: multiply + sublane reduce on VPU/XLU, no second MXU pass and no
        # 128x-padded result column.
        z = jnp.sum(h * w2_ref[...], axis=0, keepdims=True) + b2_ref[...]   # (1, tile_b)
    else:
        z = jnp.dot(w2_ref[...], h.astype(w2_ref.dtype),
                    preferred_element_type=jnp.float32) + b2_ref[...]       # (out_dim, tile_b)

    # Lane-dense store: batch runs along lanes, 4 B per sample per output.
    o_ref[...] = jax.nn.sigmoid(z).astype(o_ref.dtype)


def simplenet_forward(x, w1, b1, w2, b2, *, tile_b=2048, matmul_dtype=None):
    """x: [B, input_dim]; w1: [input_dim, hidden]; b1: [1, hidden];
       w2: [hidden, output_dim]; b2: [1, output_dim]  ->  [B, output_dim] (float32)."""
    B, input_dim = x.shape
    hidden = w1.shape[1]
    out_dim = w2.shape[1]

    fc1_mac = input_dim <= 8        # tiny-K fc1 on the VPU
    fc2_reduce = (out_dim == 1)     # single-output fc2 as multiply + sublane reduce

    # ---- batch tiling: batch lives on the lane axis; tile is a multiple of 128 lanes ----
    b_pad = _round_up(B, LANES)
    tile_b = max(LANES, (min(tile_b, b_pad) // LANES) * LANES)
    half = (b_pad // 2) // LANES * LANES
    if half >= LANES:               # guarantee >= 2 grid steps (v7x 2-TC megacore sharding)
        tile_b = min(tile_b, half)
    b_pad = _round_up(B, tile_b)
    grid = (b_pad // tile_b,)

    # ---- transposed, lane-dense operand layouts ----
    x_t = jnp.pad(x, ((0, b_pad - B), (0, 0))).T            # (input_dim, b_pad)
    w1_t = w1.T                                              # (hidden, input_dim)
    b1_t = b1.reshape(-1, 1)                                 # (hidden, 1)
    b2_t = b2.reshape(-1, 1)                                 # (out_dim, 1)
    w2_arg = w2 if fc2_reduce else w2.T                      # (hidden,1) / (out_dim,hidden)

    # Hoisted bf16 casts: only for MXU (dot) paths; VPU paths stay f32 (v5e has no bf16 VPU).
    if matmul_dtype is not None:
        if not fc1_mac:
            x_t = x_t.astype(matmul_dtype)
            w1_t = w1_t.astype(matmul_dtype)
        if not fc2_reduce:
            w2_arg = w2_arg.astype(matmul_dtype)

    const = lambda i: (0, 0)   # weights/biases: same block every step -> VMEM-resident

    flops = 2 * b_pad * (input_dim * hidden + hidden * out_dim)
    bytes_accessed = 4 * (input_dim * b_pad + w1.size + b1.size + w2.size + b2.size
                          + out_dim * b_pad)
    cost = pl.CostEstimate(flops=int(flops), transcendentals=int(b_pad * out_dim),
                           bytes_accessed=int(bytes_accessed))

    kernel = functools.partial(simplenet_kernel, fc1_mac=fc1_mac, fc2_reduce=fc2_reduce)

    out_t = pl.pallas_call(
        kernel,
        out_shape=jax.ShapeDtypeStruct((out_dim, b_pad), jnp.float32),
        grid_spec=pltpu.PrefetchScalarGridSpec(
            num_scalar_prefetch=0,
            grid=grid,
            in_specs=[
                pl.BlockSpec((input_dim, tile_b), lambda i: (0, i)),   # x tile (lane-dense)
                pl.BlockSpec(w1_t.shape, const),                       # W1^T (resident)
                pl.BlockSpec(b1_t.shape, const),                       # b1   (resident)
                pl.BlockSpec(w2_arg.shape, const),                     # W2   (resident)
                pl.BlockSpec(b2_t.shape, const),                       # b2   (resident)
            ],
            out_specs=pl.BlockSpec((out_dim, tile_b), lambda i: (0, i)),
        ),
        compiler_params=pltpu.CompilerParams(
            dimension_semantics=("parallel",),          # shard batch tiles across TCs
            vmem_limit_bytes=_vmem_limit_bytes(),
        ),
        cost_estimate=cost,
    )(x_t, w1_t, b1_t, w2_arg, b2_t)

    return out_t.T[:B]   # (B, out_dim) float32


def init_params(key, input_dim, hidden_dim, output_dim):
    """Deterministic init mimicking PyTorch nn.Linear default (U[-1/sqrt(fan_in), +]).
       Weights stored as [in, out] (transposed vs. PyTorch's [out, in])."""
    k1, k2, k3, k4 = jax.random.split(key, 4)
    bound1 = 1.0 / jnp.sqrt(jnp.float32(input_dim))
    bound2 = 1.0 / jnp.sqrt(jnp.float32(hidden_dim))
    w1 = jax.random.uniform(k1, (input_dim, hidden_dim), jnp.float32, -bound1, bound1)
    b1 = jax.random.uniform(k2, (1, hidden_dim), jnp.float32, -bound1, bound1)
    w2 = jax.random.uniform(k3, (hidden_dim, output_dim), jnp.float32, -bound2, bound2)
    b2 = jax.random.uniform(k4, (1, output_dim), jnp.float32, -bound2, bound2)
    return w1, b1, w2, b2


def _reference(x, w1, b1, w2, b2):
    # Pure-JAX reference (eval-mode dropout = identity).
    return jax.nn.sigmoid(jnp.maximum(x @ w1 + b1, 0.0) @ w2 + b2)


if __name__ == "__main__":
    # Moon data: 2 input features, 1 sigmoid output.
    batch, input_dim, hidden_dim, output_dim = 8, 2, 32, 1

    key = jax.random.PRNGKey(0)
    kx, kp = jax.random.split(key)
    x = jax.random.normal(kx, (batch, input_dim), jnp.float32)
    w1, b1, w2, b2 = init_params(kp, input_dim, hidden_dim, output_dim)

    out = simplenet_forward(x, w1, b1, w2, b2)
    out = jax.block_until_ready(out)
    ref = _reference(x, w1, b1, w2, b2)
    assert out.shape == (batch, output_dim)
    assert jnp.allclose(out, ref, atol=1e-5, rtol=1e-5)

    # Exercise the multi-tile (grid > 1) batch path as well.
    x2 = jax.random.normal(kx, (384, input_dim), jnp.float32)
    out2 = jax.block_until_ready(simplenet_forward(x2, w1, b1, w2, b2))
    assert out2.shape == (384, output_dim)
    assert jnp.allclose(out2, _reference(x2, w1, b1, w2, b2), atol=1e-5, rtol=1e-5)

    print("KERNEL_OK")
</pallas_src>

<mosaic_0001>
module attributes {stable_mosaic.version = 11 : i64} {
  func.func @simplenet_kernel(%arg0: i32, %arg1: memref<2x128xf32, #tpu.memory_space<vmem>>, %arg2: memref<32x2xf32, #tpu.memory_space<vmem>>, %arg3: memref<32x1xf32, #tpu.memory_space<vmem>>, %arg4: memref<32x1xf32, #tpu.memory_space<vmem>>, %arg5: memref<1x1xf32, #tpu.memory_space<vmem>>, %arg6: memref<1x128xf32, #tpu.memory_space<vmem>>) attributes {dimension_semantics = [#tpu.dimension_semantics<parallel>], iteration_bounds = array<i64: 1>, scalar_prefetch = 0 : i64, scratch_operands = 0 : i64, tpu.core_type = #tpu.core_type<tc>, window_params = [{transform_indices = @transform_0, window_bounds = array<i64: 2, 128>}, {pipeline_mode = #tpu.pipeline_mode<synchronous>, transform_indices = @transform_1, window_bounds = array<i64: 32, 2>}, {pipeline_mode = #tpu.pipeline_mode<synchronous>, transform_indices = @transform_2, window_bounds = array<i64: 32, 1>}, {pipeline_mode = #tpu.pipeline_mode<synchronous>, transform_indices = @transform_3, window_bounds = array<i64: 32, 1>}, {pipeline_mode = #tpu.pipeline_mode<synchronous>, transform_indices = @transform_4, window_bounds = array<i64: 1, 1>}, {transform_indices = @transform_5, window_bounds = array<i64: 1, 128>}]} {
    %c0 = arith.constant 0 : index
    %c0_0 = arith.constant 0 : index
    %0 = vector.load %arg1[%c0, %c0_0] : memref<2x128xf32, #tpu.memory_space<vmem>>, vector<2x128xf32>
    %c0_1 = arith.constant 0 : index
    %c0_2 = arith.constant 0 : index
    %1 = vector.load %arg2[%c0_1, %c0_2] : memref<32x2xf32, #tpu.memory_space<vmem>>, vector<32x2xf32>
    %2 = vector.extract_strided_slice %1 {offsets = [0, 0], sizes = [32, 1], strides = [1, 1]} : vector<32x2xf32> to vector<32x1xf32>
    %3 = vector.extract_strided_slice %0 {offsets = [0, 0], sizes = [1, 128], strides = [1, 1]} : vector<2x128xf32> to vector<1x128xf32>
    %4 = vector.broadcast %2 : vector<32x1xf32> to vector<32x128xf32>
    %5 = vector.broadcast %3 : vector<1x128xf32> to vector<32x128xf32>
    %6 = arith.mulf %4, %5 : vector<32x128xf32>
    %7 = vector.extract_strided_slice %1 {offsets = [0, 1], sizes = [32, 1], strides = [1, 1]} : vector<32x2xf32> to vector<32x1xf32>
    %8 = vector.extract_strided_slice %0 {offsets = [1, 0], sizes = [1, 128], strides = [1, 1]} : vector<2x128xf32> to vector<1x128xf32>
    %9 = vector.broadcast %7 : vector<32x1xf32> to vector<32x128xf32>
    %10 = vector.broadcast %8 : vector<1x128xf32> to vector<32x128xf32>
    %11 = arith.mulf %9, %10 : vector<32x128xf32>
    %12 = arith.addf %6, %11 : vector<32x128xf32>
    %c0_3 = arith.constant 0 : index
    %c0_4 = arith.constant 0 : index
    %13 = vector.load %arg3[%c0_3, %c0_4] : memref<32x1xf32, #tpu.memory_space<vmem>>, vector<32x1xf32>
    %14 = vector.broadcast %13 : vector<32x1xf32> to vector<32x128xf32>
    %15 = arith.addf %12, %14 : vector<32x128xf32>
    %cst = arith.constant 0.000000e+00 : f32
    %16 = vector.broadcast %cst : f32 to vector<32x128xf32>
    %17 = arith.maximumf %15, %16 : vector<32x128xf32>
    %c0_5 = arith.constant 0 : index
    %c0_6 = arith.constant 0 : index
    %18 = vector.load %arg4[%c0_5, %c0_6] : memref<32x1xf32, #tpu.memory_space<vmem>>, vector<32x1xf32>
    %19 = vector.broadcast %18 : vector<32x1xf32> to vector<32x128xf32>
    %20 = arith.mulf %17, %19 : vector<32x128xf32>
    %cst_7 = arith.constant dense<0.000000e+00> : vector<128xf32>
    %21 = vector.multi_reduction <add>, %20, %cst_7 [0] : vector<32x128xf32> to vector<128xf32>
    %22 = vector.shape_cast %21 : vector<128xf32> to vector<1x128xf32>
    %c0_8 = arith.constant 0 : index
    %c0_9 = arith.constant 0 : index
    %23 = vector.load %arg5[%c0_8, %c0_9] : memref<1x1xf32, #tpu.memory_space<vmem>>, vector<1x1xf32>
    %24 = vector.broadcast %23 : vector<1x1xf32> to vector<1x128xf32>
    %25 = arith.addf %22, %24 : vector<1x128xf32>
    %26 = arith.negf %25 : vector<1x128xf32>
    %27 = math.exp %26 : vector<1x128xf32>
    %cst_10 = arith.constant 1.000000e+00 : f32
    %28 = vector.broadcast %cst_10 : f32 to vector<1x128xf32>
    %29 = arith.addf %28, %27 : vector<1x128xf32>
    %30 = arith.divf %28, %29 : vector<1x128xf32>
    %c0_11 = arith.constant 0 : index
    %c0_12 = arith.constant 0 : index
    %31 = vector.load %arg6[%c0_11, %c0_12] : memref<1x128xf32, #tpu.memory_space<vmem>>, vector<1x128xf32>
    tpu.vector_store %arg6[%c0_11, %c0_12], %30 {strides = array<i32>} : memref<1x128xf32, #tpu.memory_space<vmem>>, vector<1x128xf32>,
    return
  }
  func.func @transform_0(%arg0: i32) -> (i32, i32) {
    %c0_i32 = arith.constant 0 : i32
    %c0_i32_0 = arith.constant 0 : i32
    return %c0_i32, %arg0 : i32, i32
  }
  func.func @transform_1(%arg0: i32) -> (i32, i32) {
    %c0_i32 = arith.constant 0 : i32
    %c0_i32_0 = arith.constant 0 : i32
    %c0_i32_1 = arith.constant 0 : i32
    return %c0_i32, %c0_i32_0 : i32, i32
  }
  func.func @transform_2(%arg0: i32) -> (i32, i32) {
    %c0_i32 = arith.constant 0 : i32
    %c0_i32_0 = arith.constant 0 : i32
    %c0_i32_1 = arith.constant 0 : i32
    return %c0_i32, %c0_i32_0 : i32, i32
  }
  func.func @transform_3(%arg0: i32) -> (i32, i32) {
    %c0_i32 = arith.constant 0 : i32
    %c0_i32_0 = arith.constant 0 : i32
    %c0_i32_1 = arith.constant 0 : i32
    return %c0_i32, %c0_i32_0 : i32, i32
  }
  func.func @transform_4(%arg0: i32) -> (i32, i32) {
    %c0_i32 = arith.constant 0 : i32
    %c0_i32_0 = arith.constant 0 : i32
    %c0_i32_1 = arith.constant 0 : i32
    return %c0_i32, %c0_i32_0 : i32, i32
  }
  func.func @transform_5(%arg0: i32) -> (i32, i32) {
    %c0_i32 = arith.constant 0 : i32
    %c0_i32_0 = arith.constant 0 : i32
    return %c0_i32, %arg0 : i32, i32
  }
}

</mosaic_0001>

<llo_original>
// kernel: tpu_custom_call.1
$region0: #{tpu_custom_call.1}
  #allocation0 [shape = 'u32[]', space=smem, size = 0x4, offset = 0x4, fixed_abs, tag = 'smem constant byte address 0x4 - core index']
  #allocation1 [shape = 'u32[144,128]{1,0:T(1,128)}', space=vmem, size = 0x12000, scoped, tag = 'internal scratch']
  #allocation2 [shape = 'f32[1,1]{1,0:T(1,128)S(1)}', space=vmem, size = 0x200, scoped, tag = 'scoped memory for tpu_custom_call.1']
  %s0 = inlined_call_operand.vmem [shape: f32[2,128], index: 0, kind: input, shape index: {}]
  %s1 = inlined_call_operand.vmem [shape: f32[32,2], index: 1, kind: input, shape index: {}]
  %s2 = inlined_call_operand.vmem [shape: f32[32,1], index: 2, kind: input, shape index: {}]
  %s3 = inlined_call_operand.vmem [shape: f32[32,1], index: 3, kind: input, shape index: {}]
  %s4 = inlined_call_operand.<no memory space> [shape: f32[1,1], index: 4, kind: input, shape index: {}]
  %s5 = inlined_call_operand.hbm [shape: f32[1,128], index: 5, kind: output, shape index: {}]
  %s6 = sld [smem:[#allocation0]]
  $region30: #{tpu_custom_call.1} parent=0
    _
  %s8 = ssub.s32 1, %s6
  %s9 = scalar_select 0, %s8, %s6
  %v10 = vstv %s4
  %11 = vst [vmem:[#allocation2] sm:$0x1] %v10
  $region1: #{tpu_custom_call.1} parent=0
    #allocation3 [shape = 'u8[512]{0}', space=vmem, size = 0x400, scoped, tag = 'output window, operand 0, single buffered']
    #allocation4 [shape = 's32[1]{0}', space=sflag, size = 0x4, scoped, tag = 'scoped memory for tpu_custom_call.1']
    %12 = vsyncpa [#allocation4], 0
    // Predicated region
    $region2: #{tpu_custom_call.1} parent=1 // pred_check
      _
    $region3: #{tpu_custom_call.1} parent=1 // pred_check_branch
      %14 = sbr.rel (0) target = $region5
    $region4: #{tpu_custom_call.1} parent=1 // pred_region
      _
    $region5: #{tpu_custom_call.1} parent=1 // pred_fallthru
      _
    // Predicated region
    $region6: #{tpu_custom_call.1} parent=1 // pred_check
      _
    $region7: #{tpu_custom_call.1} parent=1 // pred_check_branch
      %16 = sbr.rel (0) target = $region9
    $region8: #{tpu_custom_call.1} parent=1 // pred_region
      _
    $region9: #{tpu_custom_call.1} parent=1 // pred_fallthru
      _
    // Predicated region
    $region10: #{tpu_custom_call.1} parent=1 // pred_check
      _
    $region11: #{tpu_custom_call.1} parent=1 // pred_check_branch
      %18 = sbr.rel (0) target = $region13
    $region12: #{tpu_custom_call.1} parent=1 // pred_region
      _
    $region13: #{tpu_custom_call.1} parent=1 // pred_fallthru
      _
    // Predicated region
    $region14: #{tpu_custom_call.1} parent=1 // pred_check
      _
    $region15: #{tpu_custom_call.1} parent=1 // pred_check_branch
      %20 = sbr.rel (0) target = $region17
    $region16: #{tpu_custom_call.1} parent=1 // pred_region
      _
    $region17: #{tpu_custom_call.1} parent=1 // pred_fallthru
      _
    // Predicated region
    $region18: #{tpu_custom_call.1} parent=1 // pred_check
      _
    $region19: #{tpu_custom_call.1} parent=1 // pred_check_branch
      %22 = sbr.rel (0) target = $region21
    $region20: #{tpu_custom_call.1} parent=1 // pred_region
      _
    $region21: #{tpu_custom_call.1} parent=1 // pred_fallthru
      _
    %v23 = vld [vmem:[%s0] sm:$0x3]
    %v24 = vld [vmem:[%s1] sm:$0xff]
    %v25 = vld [vmem:[%s1 + $0x8] sm:$0xff]
    %v26 = vld [vmem:[%s1 + $0x10] sm:$0xff]
    %v27 = vld [vmem:[%s1 + $0x18] sm:$0xff]
    %29 = vset.pattern.permute.xlu0 0
    %30 = vperm.xlu0 %29, %v24
    %v31 = vpop.permute.xlu0 %30
    %34 = vset.pattern.permute.xlu0 0
    %35 = vperm.xlu0 %34, %v25
    %v36 = vpop.permute.xlu0 %35
    %39 = vset.pattern.permute.xlu0 0
    %40 = vperm.xlu0 %39, %v26
    %v41 = vpop.permute.xlu0 %40
    %44 = vset.pattern.permute.xlu0 0
    %45 = vperm.xlu0 %44, %v27
    %v46 = vpop.permute.xlu0 %45
    %v48 = vlaneseq
    %v49 = vshrl.u32 %v48, 7
    %v50 = vsub.s32 0, %v49
    %v51 = vrot.slane %v23, %v50
    %v52 = vmul.f32 %v31, %v51
    %v53 = vmul.f32 %v36, %v51
    %v54 = vmul.f32 %v41, %v51
    %v55 = vmul.f32 %v46, %v51
    %56 = vset.pattern.permute.xlu0 1
    %57 = vperm.xlu0 %56, %v24
    %v58 = vpop.permute.xlu0 %57
    %60 = vset.pattern.permute.xlu0 1
    %61 = vperm.xlu0 %60, %v25
    %v62 = vpop.permute.xlu0 %61
    %64 = vset.pattern.permute.xlu0 1
    %65 = vperm.xlu0 %64, %v26
    %v66 = vpop.permute.xlu0 %65
    %68 = vset.pattern.permute.xlu0 1
    %69 = vperm.xlu0 %68, %v27
    %v70 = vpop.permute.xlu0 %69
    %v72 = vlaneseq
    %v73 = vshrl.u32 %v72, 7
    %v74 = vsub.s32 1, %v73
    %v75 = vrot.slane %v23, %v74
    %v76 = vmul.f32 %v58, %v75
    %v77 = vmul.f32 %v62, %v75
    %v78 = vmul.f32 %v66, %v75
    %v79 = vmul.f32 %v70, %v75
    %v80 = vadd.f32 %v52, %v76
    %v81 = vadd.f32 %v53, %v77
    %v82 = vadd.f32 %v54, %v78
    %v83 = vadd.f32 %v55, %v79
    %v84 = vld [vmem:[%s2] sm:$0xff]
    %v85 = vld [vmem:[%s2 + $0x8] sm:$0xff]
    %v86 = vld [vmem:[%s2 + $0x10] sm:$0xff]
    %v87 = vld [vmem:[%s2 + $0x18] sm:$0xff]
    %89 = vset.pattern.permute.xlu0 0
    %90 = vperm.xlu0 %89, %v84
    %v91 = vpop.permute.xlu0 %90
    %94 = vset.pattern.permute.xlu0 0
    %95 = vperm.xlu0 %94, %v85
    %v96 = vpop.permute.xlu0 %95
    %99 = vset.pattern.permute.xlu0 0
    %100 = vperm.xlu0 %99, %v86
    %v101 = vpop.permute.xlu0 %100
    %104 = vset.pattern.permute.xlu0 0
    %105 = vperm.xlu0 %104, %v87
    %v106 = vpop.permute.xlu0 %105
    %v108 = vadd.f32 %v80, %v91
    %v109 = vadd.f32 %v81, %v96
    %v110 = vadd.f32 %v82, %v101
    %v111 = vadd.f32 %v83, %v106
    %v112 = vmax.f32 %v108, 0.0
    %v113 = vmax.f32 %v109, 0.0
    %v114 = vmax.f32 %v110, 0.0
    %v115 = vmax.f32 %v111, 0.0
    %v116 = vld [vmem:[%s3] sm:$0xff]
    %v117 = vld [vmem:[%s3 + $0x8] sm:$0xff]
    %v118 = vld [vmem:[%s3 + $0x10] sm:$0xff]
    %v119 = vld [vmem:[%s3 + $0x18] sm:$0xff]
    %121 = vset.pattern.permute.xlu0 0
    %122 = vperm.xlu0 %121, %v116
    %v123 = vpop.permute.xlu0 %122
    %126 = vset.pattern.permute.xlu0 0
    %127 = vperm.xlu0 %126, %v117
    %v128 = vpop.permute.xlu0 %127
    %131 = vset.pattern.permute.xlu0 0
    %132 = vperm.xlu0 %131, %v118
    %v133 = vpop.permute.xlu0 %132
    %136 = vset.pattern.permute.xlu0 0
    %137 = vperm.xlu0 %136, %v119
    %v138 = vpop.permute.xlu0 %137
    %v140 = vmul.f32 %v112, %v123
    %v141 = vmul.f32 %v113, %v128
    %v142 = vmul.f32 %v114, %v133
    %v143 = vmul.f32 %v115, %v138
    %v144 = vadd.f32 %v140, %v141
    %v145 = vadd.f32 %v144, %v142
    %v146 = vadd.f32 %v145, %v143
    %v147 = vrot.slane %v146, 4
    %v148 = vadd.f32 %v146, %v147
    %v149 = vrot.slane %v148, 2
    %v150 = vadd.f32 %v148, %v149
    %v151 = vrot.slane %v150, 1
    %v152 = vadd.f32 %v150, %v151
    %v153 = vld [vmem:[#allocation2] sm:$0x1]
    %155 = vset.pattern.permute.xlu0 0
    %156 = vperm.xlu0 %155, %v153
    %v157 = vpop.permute.xlu0 %156
    %v159 = vlaneseq
    %v160 = vshrl.u32 %v159, 7
    %v161 = vsub.s32 0, %v160
    %v162 = vrot.slane %v157, %v161
    %v163 = vadd.f32 %v152, %v162
    %v164 = vxor.u32 %v163, 2147483648
    %v165 = vmul.f32 %v164, 1.442695
    %v166 = vpow.pop %v165
    %v167 = vadd.f32 %v166, 1.0
    %v168 = vrcp.pop %v167
    %v169 = vmul.f32 1.0, %v168
    %170 = vst [vmem:[#allocation3] sm:$0x1] %v169
    // Predicated region
    $region22: #{tpu_custom_call.1} parent=1 // pred_check
      _
    $region23: #{tpu_custom_call.1} parent=1 // pred_check_branch
      %172 = sbr.rel (0) target = $region25
    $region24: #{tpu_custom_call.1} parent=1 // pred_region
      %s174 = ssub.s32 16, 16
      %175 = vsyncadd [#allocation4], %s174
      %s177 = sshll.u32 [#allocation3], 4
      %s178 = int_to_ptr.vmem [resolvable:$true] %s177
      %180 = dma.vmem_to_hbm [thread:$0]  %s178, 16, %s5, [#allocation4]
    $region25: #{tpu_custom_call.1} parent=1 // pred_fallthru
      _
    // Predicated region
    $region26: #{tpu_custom_call.1} parent=1 // pred_check
      _
    $region27: #{tpu_custom_call.1} parent=1 // pred_check_branch
      %182 = sbr.rel (0) target = $region29
    $region28: #{tpu_custom_call.1} parent=1 // pred_region
      %183 = dma.done [#allocation4], 16
    $region29: #{tpu_custom_call.1} parent=1 // pred_fallthru
      _
    %184 = vsyncpa [#allocation4], 1

</llo_original>
